<compile_context>
chip_gen: v7x
topology: tpu7x:2x2x1
jax: 0.10.0
libtpu: 0.0.40
codegen_flags: <defaults>
</compile_context>

<pallas_src>
import jax
import jax.numpy as jnp
from jax.experimental import pallas as pl
from jax.experimental.pallas import tpu as pltpu

LANES = 128      # lane width of the point layout
TR_MAX = 2048    # max sublane rows per grid step (3 MiB input block)


def _sphere_res_kernel(sph_ref, pts_ref, out_ref):
    # sph_ref : SMEM f32[4]            -> [cx, cy, cz, r]
    # pts_ref : VMEM f32[3, tr, LANES] -> coordinate-major point tile
    # out_ref : VMEM f32[tr, LANES]
    cx = sph_ref[0]
    cy = sph_ref[1]
    cz = sph_ref[2]
    r = sph_ref[3]

    dx = pts_ref[0] - cx          # (tr, LANES)
    dy = pts_ref[1] - cy
    dz = pts_ref[2] - cz

    d2 = dx * dx + dy * dy + dz * dz     # squared norm, single sqrt below
    out_ref[...] = jnp.sqrt(d2) - r


def sphere_res_layer(points, sphere, out_height, out_width):
    """points: (B, C, H, 3) float32; sphere: (4,) float32 [cx, cy, cz, r].
    Returns (B, 1, out_width, out_height), matching the PyTorch module."""
    b, c, h, w = points.shape
    assert w == 3, "last axis must hold xyz coordinates"
    # PyTorch view(batch, 1, height, width) requires C*H == height*width.
    assert c * h == out_height * out_width, "view() size mismatch (same as PyTorch)"
    n = b * c * h

    # Sublane/lane-dense point layout: (3, R_pad, LANES).
    rows = pl.cdiv(n, LANES)
    tr = min(TR_MAX, ((rows + 7) // 8) * 8)       # sublane tile, multiple of 8
    r_pad = pl.cdiv(rows, tr) * tr
    n_pad = r_pad * LANES

    # Transpose first, then pad only the lane axis (single cheap XLA pass).
    pts_t = points.reshape(n, 3).astype(jnp.float32).T        # (3, n)
    pts_t = jnp.pad(pts_t, ((0, 0), (0, n_pad - n)))           # (3, n_pad)
    pts_t = pts_t.reshape(3, r_pad, LANES)

    sph = sphere.astype(jnp.float32)                           # (4,) scalars

    grid = (r_pad // tr,)
    out = pl.pallas_call(
        _sphere_res_kernel,
        out_shape=jax.ShapeDtypeStruct((r_pad, LANES), jnp.float32),
        grid=grid,
        in_specs=[
            pl.BlockSpec(memory_space=pltpu.MemorySpace.SMEM),     # sphere scalars
            pl.BlockSpec((3, tr, LANES), lambda i: (0, i, 0)),     # point tile
        ],
        out_specs=pl.BlockSpec((tr, LANES), lambda i: (i, 0)),
        compiler_params=pltpu.CompilerParams(
            dimension_semantics=("parallel",),
            vmem_limit_bytes=32 * 1024 * 1024,
        ),
    )(sph, pts_t)

    res = out.reshape(-1)[:n]
    res4 = res.reshape(b, 1, out_height, out_width)
    return jnp.transpose(res4, (0, 1, 3, 2))                   # .permute(0, 1, 3, 2)


if __name__ == "__main__":
    key = jax.random.PRNGKey(0)
    ks, kp = jax.random.split(key, 2)

    # Module constructor args: batch=2, width=16, height=16.
    batch, mod_width, mod_height = 2, 16, 16

    # sphere = Parameter(torch.rand(4))
    sphere = jax.random.uniform(ks, (4,), jnp.float32)

    # points: (B, C, H, 3) with C*H == mod_height*mod_width = 256.
    channels, h_pts = 4, 64
    points = jax.random.uniform(kp, (batch, channels, h_pts, 3), jnp.float32)

    out = jax.block_until_ready(
        sphere_res_layer(points, sphere, mod_height, mod_width)
    )

    # Pure-JAX reference of the PyTorch forward.
    res = jnp.linalg.norm(points - sphere[0:3], axis=3) - sphere[3]
    ref = jnp.transpose(
        res.reshape(batch, 1, mod_height, mod_width), (0, 1, 3, 2)
    )

    assert out.shape == (batch, 1, mod_width, mod_height)
    assert jnp.allclose(out, ref, atol=1e-5, rtol=1e-5)
    print("KERNEL_OK")
</pallas_src>

<mosaic_0001>
module attributes {stable_mosaic.version = 11 : i64} {
  func.func @_sphere_res_kernel(%arg0: i32, %arg1: memref<4xf32, #tpu.memory_space<smem>>, %arg2: memref<3x8x128xf32, #tpu.memory_space<vmem>>, %arg3: memref<8x128xf32, #tpu.memory_space<vmem>>) attributes {dimension_semantics = [#tpu.dimension_semantics<parallel>], iteration_bounds = array<i64: 1>, scalar_prefetch = 0 : i64, scratch_operands = 0 : i64, tpu.core_type = #tpu.core_type<tc>, window_params = [{transform_indices = @transform_0, window_bounds = array<i64: 4>}, {transform_indices = @transform_1, window_bounds = array<i64: 3, 8, 128>}, {transform_indices = @transform_2, window_bounds = array<i64: 8, 128>}]} {
    %c0 = arith.constant 0 : index
    %0 = memref.load %arg1[%c0] : memref<4xf32, #tpu.memory_space<smem>>
    %c1 = arith.constant 1 : index
    %1 = memref.load %arg1[%c1] : memref<4xf32, #tpu.memory_space<smem>>
    %c2 = arith.constant 2 : index
    %2 = memref.load %arg1[%c2] : memref<4xf32, #tpu.memory_space<smem>>
    %c3 = arith.constant 3 : index
    %3 = memref.load %arg1[%c3] : memref<4xf32, #tpu.memory_space<smem>>
    %c0_0 = arith.constant 0 : index
    %c0_1 = arith.constant 0 : index
    %c0_2 = arith.constant 0 : index
    %4 = vector.load %arg2[%c0_0, %c0_1, %c0_2] : memref<3x8x128xf32, #tpu.memory_space<vmem>>, vector<1x8x128xf32>
    %5 = vector.shape_cast %4 : vector<1x8x128xf32> to vector<8x128xf32>
    %6 = vector.broadcast %0 : f32 to vector<8x128xf32>
    %7 = arith.subf %5, %6 : vector<8x128xf32>
    %c1_3 = arith.constant 1 : index
    %c0_4 = arith.constant 0 : index
    %c0_5 = arith.constant 0 : index
    %8 = vector.load %arg2[%c1_3, %c0_4, %c0_5] : memref<3x8x128xf32, #tpu.memory_space<vmem>>, vector<1x8x128xf32>
    %9 = vector.shape_cast %8 : vector<1x8x128xf32> to vector<8x128xf32>
    %10 = vector.broadcast %1 : f32 to vector<8x128xf32>
    %11 = arith.subf %9, %10 : vector<8x128xf32>
    %c2_6 = arith.constant 2 : index
    %c0_7 = arith.constant 0 : index
    %c0_8 = arith.constant 0 : index
    %12 = vector.load %arg2[%c2_6, %c0_7, %c0_8] : memref<3x8x128xf32, #tpu.memory_space<vmem>>, vector<1x8x128xf32>
    %13 = vector.shape_cast %12 : vector<1x8x128xf32> to vector<8x128xf32>
    %14 = vector.broadcast %2 : f32 to vector<8x128xf32>
    %15 = arith.subf %13, %14 : vector<8x128xf32>
    %16 = arith.mulf %7, %7 : vector<8x128xf32>
    %17 = arith.mulf %11, %11 : vector<8x128xf32>
    %18 = arith.addf %16, %17 : vector<8x128xf32>
    %19 = arith.mulf %15, %15 : vector<8x128xf32>
    %20 = arith.addf %18, %19 : vector<8x128xf32>
    %21 = math.sqrt %20 : vector<8x128xf32>
    %22 = vector.broadcast %3 : f32 to vector<8x128xf32>
    %23 = arith.subf %21, %22 : vector<8x128xf32>
    %c0_9 = arith.constant 0 : index
    %c0_10 = arith.constant 0 : index
    %24 = vector.load %arg3[%c0_9, %c0_10] : memref<8x128xf32, #tpu.memory_space<vmem>>, vector<8x128xf32>
    tpu.vector_store %arg3[%c0_9, %c0_10], %23 {strides = array<i32>} : memref<8x128xf32, #tpu.memory_space<vmem>>, vector<8x128xf32>,
    return
  }
  func.func @transform_0(%arg0: i32) -> i32 {
    %c0_i32 = arith.constant 0 : i32
    %c0_i32_0 = arith.constant 0 : i32
    return %c0_i32 : i32
  }
  func.func @transform_1(%arg0: i32) -> (i32, i32, i32) {
    %c0_i32 = arith.constant 0 : i32
    %c0_i32_0 = arith.constant 0 : i32
    %c0_i32_1 = arith.constant 0 : i32
    return %c0_i32, %arg0, %c0_i32_0 : i32, i32, i32
  }
  func.func @transform_2(%arg0: i32) -> (i32, i32) {
    %c0_i32 = arith.constant 0 : i32
    %c0_i32_0 = arith.constant 0 : i32
    return %arg0, %c0_i32 : i32, i32
  }
}

</mosaic_0001>

<llo_original>
// kernel: tpu_custom_call.1
$region0: #{tpu_custom_call.1}
  #allocation0 [shape = 'u32[]', space=smem, size = 0x4, offset = 0x4, fixed_abs, tag = 'smem constant byte address 0x4 - core index']
  #allocation1 [shape = 'u32[144,128]{1,0:T(1,128)}', space=vmem, size = 0x12000, scoped, tag = 'internal scratch']
  %s0 = inlined_call_operand.hbm [shape: f32[4], index: 0, kind: input, shape index: {}]
  %s1 = inlined_call_operand.hbm [shape: f32[3,8,128], index: 1, kind: input, shape index: {}]
  %s2 = inlined_call_operand.hbm [shape: f32[8,128], index: 2, kind: output, shape index: {}]
  %s3 = sld [smem:[#allocation0]]
  $region26: #{tpu_custom_call.1} parent=0
    _
  %s5 = ssub.s32 1, %s3
  %s6 = scalar_select 0, %s5, %s3
  $region1: #{tpu_custom_call.1} parent=0
    #allocation2 [shape = 'u8[512]{0}', space=smem, size = 0x200, scoped, tag = 'input window, operand 0, single buffered']
    #allocation3 [shape = 's32[1]{0}', space=sflag, size = 0x4, scoped, tag = 'scoped memory for tpu_custom_call.1']
    #allocation4 [shape = 's32[1]{0}', space=sflag, size = 0x4, scoped, tag = 'scoped memory for tpu_custom_call.1']
    #allocation5 [shape = 's32[1]{0}', space=sflag, size = 0x4, scoped, tag = 'scoped memory for tpu_custom_call.1']
    #allocation6 [shape = 'u8[12288]{0}', space=vmem, size = 0x3000, scoped, tag = 'input window, operand 1, single buffered']
    #allocation7 [shape = 'u8[4096]{0}', space=vmem, size = 0x1000, scoped, tag = 'output window, operand 0, single buffered']
    %7 = vsyncpa [#allocation5], 0
    %8 = vsyncpa [#allocation3], 0
    %9 = vsyncpa [#allocation4], 0
    // Predicated region
    $region2: #{tpu_custom_call.1} parent=1 // pred_check
      _
    $region3: #{tpu_custom_call.1} parent=1 // pred_check_branch
      %11 = sbr.rel (0) target = $region5
    $region4: #{tpu_custom_call.1} parent=1 // pred_region
      %s13 = ssub.s32 16, 16
      %14 = vsyncadd [#allocation5], %s13
      %17 = dma.hbm_to_smem %s0, 16, [#allocation2], [#allocation5]
    $region5: #{tpu_custom_call.1} parent=1 // pred_fallthru
      _
    // Predicated region
    $region6: #{tpu_custom_call.1} parent=1 // pred_check
      _
    $region7: #{tpu_custom_call.1} parent=1 // pred_check_branch
      %19 = sbr.rel (0) target = $region9
    $region8: #{tpu_custom_call.1} parent=1 // pred_region
      %s21 = ssub.s32 384, 384
      %22 = vsyncadd [#allocation3], %s21
      %s23 = sshll.u32 [#allocation6], 4
      %s24 = int_to_ptr.vmem [resolvable:$true] %s23
      %29 = dma.hbm_to_vmem [thread:$0]  %s1, 384, %s24, [#allocation3], 128, 128, 8
    $region9: #{tpu_custom_call.1} parent=1 // pred_fallthru
      _
    // Predicated region
    $region10: #{tpu_custom_call.1} parent=1 // pred_check
      _
    $region11: #{tpu_custom_call.1} parent=1 // pred_check_branch
      %31 = sbr.rel (0) target = $region13
    $region12: #{tpu_custom_call.1} parent=1 // pred_region
      %32 = dma.done [#allocation5], 16
    $region13: #{tpu_custom_call.1} parent=1 // pred_fallthru
      _
    // Predicated region
    $region14: #{tpu_custom_call.1} parent=1 // pred_check
      _
    $region15: #{tpu_custom_call.1} parent=1 // pred_check_branch
      %34 = sbr.rel (0) target = $region17
    $region16: #{tpu_custom_call.1} parent=1 // pred_region
      %35 = dma.done [#allocation3], 384
    $region17: #{tpu_custom_call.1} parent=1 // pred_fallthru
      _
    %36 = sfence
    %s37 = sld [smem:[#allocation2]]
    %s38 = sld [smem:[#allocation2 + $0x1]]
    %s39 = sld [smem:[#allocation2 + $0x2]]
    %s40 = sld [smem:[#allocation2 + $0x3]]
    %v41 = vld [vmem:[#allocation6] sm:$0xff]
    %v42 = vstv %s37
    %v43 = vsub.f32 %v41, %v42
    %s44 = scalar_lea.vmem [#allocation6], 8
    %v45 = vld [vmem:[%s44] sm:$0xff]
    %v46 = vstv %s38
    %v47 = vsub.f32 %v45, %v46
    %s48 = scalar_lea.vmem [#allocation6], 16
    %v49 = vld [vmem:[%s48] sm:$0xff]
    %v50 = vstv %s39
    %v51 = vsub.f32 %v49, %v50
    %v52 = vmul.f32 %v43, %v43
    %v53 = vmul.f32 %v47, %v47
    %v54 = vadd.f32 %v52, %v53
    %v55 = vmul.f32 %v51, %v51
    %v56 = vadd.f32 %v54, %v55
    %v57 = vrsqrt.pop %v56
    %v58 = vmul.f32 %v56, %v57
    %vm59 = vcmp.eq.f32.partialorder %v56, inf
    %v60 = vsel %vm59, %v56, %v58
    %vm61 = vcmp.eq.f32.partialorder %v56, 0.0
    %v62 = vand.u32 %v56, 2147483648
    %v63 = vsel %vm61, %v62, %v60
    %v64 = vstv %s40
    %v65 = vsub.f32 %v63, %v64
    %66 = vst [vmem:[#allocation7] sm:$0xff] %v65
    // Predicated region
    $region18: #{tpu_custom_call.1} parent=1 // pred_check
      _
    $region19: #{tpu_custom_call.1} parent=1 // pred_check_branch
      %68 = sbr.rel (0) target = $region21
    $region20: #{tpu_custom_call.1} parent=1 // pred_region
      %s70 = ssub.s32 128, 128
      %71 = vsyncadd [#allocation4], %s70
      %s73 = sshll.u32 [#allocation7], 4
      %s74 = int_to_ptr.vmem [resolvable:$true] %s73
      %76 = dma.vmem_to_hbm [thread:$0]  %s74, 128, %s2, [#allocation4]
    $region21: #{tpu_custom_call.1} parent=1 // pred_fallthru
      _
    // Predicated region
    $region22: #{tpu_custom_call.1} parent=1 // pred_check
      _
    $region23: #{tpu_custom_call.1} parent=1 // pred_check_branch
      %78 = sbr.rel (0) target = $region25
    $region24: #{tpu_custom_call.1} parent=1 // pred_region
      %79 = dma.done [#allocation4], 128
    $region25: #{tpu_custom_call.1} parent=1 // pred_fallthru
      _
    %80 = vsyncpa [#allocation3], 1
    %81 = vsyncpa [#allocation4], 1
    %82 = vsyncpa [#allocation5], 1

</llo_original>
